<compile_context>
chip_gen: v6e
topology: v6e:2x2x1
jax: 0.10.0
libtpu: 0.0.40
codegen_flags: <defaults>
</compile_context>

<pallas_src>
import functools

import jax
import jax.numpy as jnp
import numpy as np
from jax.experimental import pallas as pl
from jax.experimental.pallas import tpu as pltpu

NUM_CLASSES = 4          # logit channels C = NUM_CLASSES + 1 ("no object" slot)
B, Q = 2, 8              # batch, queries
C = NUM_CLASSES + 1
T = 3                    # matched targets per batch element


def _criterion_kernel(num_classes, fsrc_ref, ftgt_ref, labels_ref,
                      logits_ref, pbox_ref, tbox_ref, out_ref):
    """One launch computes loss_ce, loss_bbox, loss_giou.

    fsrc_ref   : (N,)    int32  SMEM  flat matched query index (b*Q + q)
    ftgt_ref   : (N,)    int32  SMEM  flat matched target index into tables
    labels_ref : (Tt,)   int32  SMEM  flattened target labels
    logits_ref : (B*Q,C) f32    VMEM  pred_logits, natural layout
    pbox_ref   : (B*Q,4) f32    SMEM  pred_boxes (xyxy), natural layout
    tbox_ref   : (Tt,4)  f32    SMEM  flattened target boxes (xyxy)
    out_ref    : (1,128) f32    VMEM  lanes 0..2 = (ce, bbox, giou)
    """
    logits = logits_ref[...]                                   # (R, C)
    r, c = logits.shape
    n = fsrc_ref.shape[0]
    inv_n = 1.0 / float(n)

    # ------------------------------------------------------------------
    # loss_labels: softmax cross entropy, ignore_index == num_classes
    # (matches F.cross_entropy(..., ignore_index=num_classes), mean over
    #  non-ignored targets).
    # ------------------------------------------------------------------
    # Fused scatter target_classes[fsrc[k]] = labels[ftgt[k]] as a sum of
    # independent one-hot contributions (matcher guarantees unique rows).
    row = jax.lax.broadcasted_iota(jnp.int32, (r, 1), 0)       # (R, 1)
    delta = jnp.zeros((r, 1), jnp.int32)
    for k in range(n):
        lbl = labels_ref[ftgt_ref[k]]                          # scalar int32
        onehot = (row == fsrc_ref[k]).astype(jnp.int32)
        delta = delta + onehot * (lbl - num_classes)
    tgt_cls = num_classes + delta                              # (R, 1)

    # Lane-axis (class) logsumexp + target-logit gather via one-hot.
    m = jnp.max(logits, axis=-1, keepdims=True)                # (R, 1)
    lse = jnp.log(jnp.sum(jnp.exp(logits - m), axis=-1, keepdims=True)) + m
    lane = jax.lax.broadcasted_iota(jnp.int32, (r, c), 1)      # (R, C)
    onehot_cls = (lane == tgt_cls).astype(jnp.float32)
    tgt_logit = jnp.sum(logits * onehot_cls, axis=-1, keepdims=True)   # (R, 1)

    nll = lse - tgt_logit                                      # (R, 1)
    valid = (tgt_cls != num_classes).astype(jnp.float32)       # (R, 1)
    ce_sum = jnp.sum(nll * valid)
    cnt = jnp.sum(valid)
    # NOTE: matches F.cross_entropy(ignore_index=...): cnt == 0 gives NaN.
    loss_ce = ce_sum / cnt

    # ------------------------------------------------------------------
    # loss_boxes: L1 + (1 - diag GIoU), mean over matched pairs.
    # N is tiny -> unrolled scalar loop; gathers are scalar SMEM reads.
    # ------------------------------------------------------------------
    l1_sum = jnp.float32(0.0)
    giou_sum = jnp.float32(0.0)
    for k in range(n):
        si = fsrc_ref[k]
        ti = ftgt_ref[k]
        sx0 = pbox_ref[si, 0]; sy0 = pbox_ref[si, 1]
        sx1 = pbox_ref[si, 2]; sy1 = pbox_ref[si, 3]
        tx0 = tbox_ref[ti, 0]; ty0 = tbox_ref[ti, 1]
        tx1 = tbox_ref[ti, 2]; ty1 = tbox_ref[ti, 3]

        l1_sum = l1_sum + (jnp.abs(sx0 - tx0) + jnp.abs(sy0 - ty0)
                           + jnp.abs(sx1 - tx1) + jnp.abs(sy1 - ty1))

        area_s = (sx1 - sx0) * (sy1 - sy0)
        area_t = (tx1 - tx0) * (ty1 - ty0)
        iw = jnp.maximum(jnp.minimum(sx1, tx1) - jnp.maximum(sx0, tx0), 0.0)
        ih = jnp.maximum(jnp.minimum(sy1, ty1) - jnp.maximum(sy0, ty0), 0.0)
        inter = iw * ih
        union = area_s + area_t - inter
        iou = inter / union                                    # NaN on degenerate boxes, same as ref
        cw = jnp.maximum(jnp.maximum(sx1, tx1) - jnp.minimum(sx0, tx0), 0.0)
        ch = jnp.maximum(jnp.maximum(sy1, ty1) - jnp.minimum(sy0, ty0), 0.0)
        c_area = cw * ch
        giou = iou - (c_area - union) / c_area
        giou_sum = giou_sum + (1.0 - giou)

    loss_bbox = l1_sum * inv_n
    loss_giou = giou_sum * inv_n

    # ------------------------------------------------------------------
    # Single lane-dense (1, 128) output: lanes 0..2 = (ce, bbox, giou).
    # ------------------------------------------------------------------
    out_lane = jax.lax.broadcasted_iota(jnp.int32, (1, 128), 1)
    out_ref[...] = jnp.where(out_lane == 0, loss_ce,
                   jnp.where(out_lane == 1, loss_bbox,
                   jnp.where(out_lane == 2, loss_giou, 0.0)))


def _run_kernel(flat_src, flat_tgt, labels_all, logits2d, pboxes2d, tboxes_all,
                num_classes):
    kernel = functools.partial(_criterion_kernel, num_classes)
    smem = pl.BlockSpec(memory_space=pltpu.MemorySpace.SMEM)
    vmem = pl.BlockSpec(memory_space=pltpu.MemorySpace.VMEM)
    out = pl.pallas_call(
        kernel,
        out_shape=jax.ShapeDtypeStruct((1, 128), jnp.float32),
        in_specs=[smem, smem, smem, vmem, smem, smem],
        out_specs=vmem,
    )(flat_src, flat_tgt, labels_all, logits2d, pboxes2d, tboxes_all)
    return out[0, 0], out[0, 1], out[0, 2]


def set_criterion_forward(outputs, targets, indices, num_classes=NUM_CLASSES):
    """JAX glue mirroring SetCriterion.forward (losses = ['labels', 'boxes'])."""
    pred_logits = outputs['pred_logits']            # (B, Q, C)
    pred_boxes = outputs['pred_boxes']              # (B, Q, 4)
    b, q, c = pred_logits.shape

    # Host-side (numpy) index bookkeeping; the matcher output lives on host.
    src_np = [np.asarray(src, dtype=np.int32) for src, _ in indices]
    tgt_np = [np.asarray(t, dtype=np.int32) for _, t in indices]
    batch_idx = np.concatenate(
        [np.full(s.shape, i, dtype=np.int32) for i, s in enumerate(src_np)])
    src_idx = np.concatenate(src_np)
    tgt_idx = np.concatenate(tgt_np)
    t_counts = np.array([int(t['labels'].shape[0]) for t in targets], dtype=np.int32)
    t_offsets = np.concatenate(
        [np.zeros(1, np.int32), np.cumsum(t_counts)[:-1].astype(np.int32)])

    flat_src = jnp.asarray(batch_idx * q + src_idx, dtype=jnp.int32)       # (N,)
    flat_tgt = jnp.asarray(t_offsets[batch_idx] + tgt_idx, dtype=jnp.int32)  # (N,)

    # Flattened (ragged-safe) target tables: the only remaining XLA HLOs.
    labels_all = jnp.concatenate([t['labels'] for t in targets]).astype(jnp.int32)
    tboxes_all = jnp.concatenate([t['boxes'] for t in targets], axis=0).astype(jnp.float32)

    # Natural slabs — reshape only, no transpose / gather.
    logits2d = pred_logits.reshape(b * q, c).astype(jnp.float32)           # (B*Q, C)
    pboxes2d = pred_boxes.reshape(b * q, 4).astype(jnp.float32)            # (B*Q, 4)

    ce, bbox, giou = _run_kernel(flat_src, flat_tgt, labels_all,
                                 logits2d, pboxes2d, tboxes_all, num_classes)
    return {'loss_ce': ce, 'loss_bbox': bbox, 'loss_giou': giou}


# ---------------- pure-JAX reference (for correctness check only) ----------------
def _reference(outputs, targets, indices, num_classes=NUM_CLASSES):
    pred_logits = outputs['pred_logits']
    pred_boxes = outputs['pred_boxes']
    b, q, c = pred_logits.shape
    batch_idx = jnp.concatenate(
        [jnp.full(src.shape, i, dtype=jnp.int32) for i, (src, _) in enumerate(indices)])
    src_idx = jnp.concatenate([src for src, _ in indices])
    tgt_cls_o = jnp.concatenate(
        [targets[i]['labels'][j] for i, (_, j) in enumerate(indices)])
    target_classes = jnp.full((b, q), num_classes, dtype=jnp.int32)
    target_classes = target_classes.at[batch_idx, src_idx].set(tgt_cls_o)

    logp = jax.nn.log_softmax(pred_logits, axis=-1).reshape(b * q, c)
    tflat = target_classes.reshape(b * q)
    nll = -jnp.take_along_axis(logp, jnp.clip(tflat, 0, c - 1)[:, None], axis=1)[:, 0]
    valid = (tflat != num_classes)
    loss_ce = jnp.sum(jnp.where(valid, nll, 0.0)) / jnp.sum(valid)

    sb = pred_boxes[batch_idx, src_idx]
    tb = jnp.concatenate(
        [targets[i]['boxes'][j] for i, (_, j) in enumerate(indices)], axis=0)
    n = sb.shape[0]
    loss_bbox = jnp.sum(jnp.abs(sb - tb)) / n
    area_s = (sb[:, 2] - sb[:, 0]) * (sb[:, 3] - sb[:, 1])
    area_t = (tb[:, 2] - tb[:, 0]) * (tb[:, 3] - tb[:, 1])
    iw = jnp.maximum(jnp.minimum(sb[:, 2], tb[:, 2]) - jnp.maximum(sb[:, 0], tb[:, 0]), 0.0)
    ih = jnp.maximum(jnp.minimum(sb[:, 3], tb[:, 3]) - jnp.maximum(sb[:, 1], tb[:, 1]), 0.0)
    inter = iw * ih
    union = area_s + area_t - inter
    iou = inter / union
    cw = jnp.maximum(jnp.maximum(sb[:, 2], tb[:, 2]) - jnp.minimum(sb[:, 0], tb[:, 0]), 0.0)
    ch = jnp.maximum(jnp.maximum(sb[:, 3], tb[:, 3]) - jnp.minimum(sb[:, 1], tb[:, 1]), 0.0)
    c_area = cw * ch
    giou = iou - (c_area - union) / c_area
    loss_giou = jnp.sum(1.0 - giou) / n
    return {'loss_ce': loss_ce, 'loss_bbox': loss_bbox, 'loss_giou': loss_giou}


def _make_boxes(key, shape):
    kc, ks = jax.random.split(key)
    centers = jax.random.uniform(kc, shape + (2,), minval=0.3, maxval=0.7)
    sizes = jax.random.uniform(ks, shape + (2,), minval=0.1, maxval=0.3)
    return jnp.concatenate([centers - sizes / 2, centers + sizes / 2], axis=-1)


if __name__ == "__main__":
    key = jax.random.PRNGKey(0)
    k_log, k_pb, k_tl0, k_tb0, k_tl1, k_tb1 = jax.random.split(key, 6)

    outputs = {
        'pred_logits': jax.random.normal(k_log, (B, Q, C), dtype=jnp.float32),
        'pred_boxes': _make_boxes(k_pb, (B, Q)).astype(jnp.float32),
    }
    targets = [
        {'labels': jax.random.randint(k_tl0, (T,), 0, NUM_CLASSES, dtype=jnp.int32),
         'boxes': _make_boxes(k_tb0, (T,)).astype(jnp.float32)},
        {'labels': jax.random.randint(k_tl1, (T,), 0, NUM_CLASSES, dtype=jnp.int32),
         'boxes': _make_boxes(k_tb1, (T,)).astype(jnp.float32)},
    ]
    # Deterministic "matcher" output: list of (src_query_idx, target_idx) per batch.
    indices = [
        (jnp.array([2, 5, 7], dtype=jnp.int32), jnp.array([0, 1, 2], dtype=jnp.int32)),
        (jnp.array([1, 3, 6], dtype=jnp.int32), jnp.array([2, 0, 1], dtype=jnp.int32)),
    ]

    losses = set_criterion_forward(outputs, targets, indices)
    jax.block_until_ready(losses)

    ref = _reference(outputs, targets, indices)
    for name in ('loss_ce', 'loss_bbox', 'loss_giou'):
        np.testing.assert_allclose(np.asarray(losses[name]), np.asarray(ref[name]),
                                   rtol=1e-5, atol=1e-5)

    print("KERNEL_OK")
</pallas_src>

<mosaic_0001>
module attributes {stable_mosaic.version = 11 : i64} {
  func.func @_criterion_kernel(%arg0: memref<6xi32, #tpu.memory_space<smem>>, %arg1: memref<6xi32, #tpu.memory_space<smem>>, %arg2: memref<6xi32, #tpu.memory_space<smem>>, %arg3: memref<16x5xf32, #tpu.memory_space<vmem>>, %arg4: memref<16x4xf32, #tpu.memory_space<smem>>, %arg5: memref<6x4xf32, #tpu.memory_space<smem>>, %arg6: memref<1x128xf32, #tpu.memory_space<vmem>>) attributes {dimension_semantics = [], scalar_prefetch = 0 : i64, scratch_operands = 0 : i64, tpu.core_type = #tpu.core_type<tc>} {
    %c0 = arith.constant 0 : index
    %c0_0 = arith.constant 0 : index
    %0 = vector.load %arg3[%c0, %c0_0] : memref<16x5xf32, #tpu.memory_space<vmem>>, vector<16x5xf32>
    %1 = tpu.iota {dimensions = array<i32: 0>} : vector<16x1xi32>
    %c0_i32 = arith.constant 0 : i32
    %2 = vector.broadcast %c0_i32 : i32 to vector<16x1xi32>
    %c0_1 = arith.constant 0 : index
    %3 = memref.load %arg1[%c0_1] : memref<6xi32, #tpu.memory_space<smem>>
    %4 = arith.index_cast %3 : i32 to index
    %5 = memref.load %arg2[%4] : memref<6xi32, #tpu.memory_space<smem>>
    %c0_2 = arith.constant 0 : index
    %6 = memref.load %arg0[%c0_2] : memref<6xi32, #tpu.memory_space<smem>>
    %7 = vector.broadcast %6 : i32 to vector<16x1xi32>
    %8 = arith.cmpi eq, %1, %7 : vector<16x1xi32>
    %9 = arith.extui %8 : vector<16x1xi1> to vector<16x1xi32>
    %c4_i32 = arith.constant 4 : i32
    %10 = arith.subi %5, %c4_i32 : i32
    %11 = vector.broadcast %10 : i32 to vector<16x1xi32>
    %12 = arith.muli %9, %11 : vector<16x1xi32>
    %13 = arith.addi %2, %12 : vector<16x1xi32>
    %c1 = arith.constant 1 : index
    %14 = memref.load %arg1[%c1] : memref<6xi32, #tpu.memory_space<smem>>
    %15 = arith.index_cast %14 : i32 to index
    %16 = memref.load %arg2[%15] : memref<6xi32, #tpu.memory_space<smem>>
    %c1_3 = arith.constant 1 : index
    %17 = memref.load %arg0[%c1_3] : memref<6xi32, #tpu.memory_space<smem>>
    %18 = vector.broadcast %17 : i32 to vector<16x1xi32>
    %19 = arith.cmpi eq, %1, %18 : vector<16x1xi32>
    %20 = arith.extui %19 : vector<16x1xi1> to vector<16x1xi32>
    %c4_i32_4 = arith.constant 4 : i32
    %21 = arith.subi %16, %c4_i32_4 : i32
    %22 = vector.broadcast %21 : i32 to vector<16x1xi32>
    %23 = arith.muli %20, %22 : vector<16x1xi32>
    %24 = arith.addi %13, %23 : vector<16x1xi32>
    %c2 = arith.constant 2 : index
    %25 = memref.load %arg1[%c2] : memref<6xi32, #tpu.memory_space<smem>>
    %26 = arith.index_cast %25 : i32 to index
    %27 = memref.load %arg2[%26] : memref<6xi32, #tpu.memory_space<smem>>
    %c2_5 = arith.constant 2 : index
    %28 = memref.load %arg0[%c2_5] : memref<6xi32, #tpu.memory_space<smem>>
    %29 = vector.broadcast %28 : i32 to vector<16x1xi32>
    %30 = arith.cmpi eq, %1, %29 : vector<16x1xi32>
    %31 = arith.extui %30 : vector<16x1xi1> to vector<16x1xi32>
    %c4_i32_6 = arith.constant 4 : i32
    %32 = arith.subi %27, %c4_i32_6 : i32
    %33 = vector.broadcast %32 : i32 to vector<16x1xi32>
    %34 = arith.muli %31, %33 : vector<16x1xi32>
    %35 = arith.addi %24, %34 : vector<16x1xi32>
    %c3 = arith.constant 3 : index
    %36 = memref.load %arg1[%c3] : memref<6xi32, #tpu.memory_space<smem>>
    %37 = arith.index_cast %36 : i32 to index
    %38 = memref.load %arg2[%37] : memref<6xi32, #tpu.memory_space<smem>>
    %c3_7 = arith.constant 3 : index
    %39 = memref.load %arg0[%c3_7] : memref<6xi32, #tpu.memory_space<smem>>
    %40 = vector.broadcast %39 : i32 to vector<16x1xi32>
    %41 = arith.cmpi eq, %1, %40 : vector<16x1xi32>
    %42 = arith.extui %41 : vector<16x1xi1> to vector<16x1xi32>
    %c4_i32_8 = arith.constant 4 : i32
    %43 = arith.subi %38, %c4_i32_8 : i32
    %44 = vector.broadcast %43 : i32 to vector<16x1xi32>
    %45 = arith.muli %42, %44 : vector<16x1xi32>
    %46 = arith.addi %35, %45 : vector<16x1xi32>
    %c4 = arith.constant 4 : index
    %47 = memref.load %arg1[%c4] : memref<6xi32, #tpu.memory_space<smem>>
    %48 = arith.index_cast %47 : i32 to index
    %49 = memref.load %arg2[%48] : memref<6xi32, #tpu.memory_space<smem>>
    %c4_9 = arith.constant 4 : index
    %50 = memref.load %arg0[%c4_9] : memref<6xi32, #tpu.memory_space<smem>>
    %51 = vector.broadcast %50 : i32 to vector<16x1xi32>
    %52 = arith.cmpi eq, %1, %51 : vector<16x1xi32>
    %53 = arith.extui %52 : vector<16x1xi1> to vector<16x1xi32>
    %c4_i32_10 = arith.constant 4 : i32
    %54 = arith.subi %49, %c4_i32_10 : i32
    %55 = vector.broadcast %54 : i32 to vector<16x1xi32>
    %56 = arith.muli %53, %55 : vector<16x1xi32>
    %57 = arith.addi %46, %56 : vector<16x1xi32>
    %c5 = arith.constant 5 : index
    %58 = memref.load %arg1[%c5] : memref<6xi32, #tpu.memory_space<smem>>
    %59 = arith.index_cast %58 : i32 to index
    %60 = memref.load %arg2[%59] : memref<6xi32, #tpu.memory_space<smem>>
    %c5_11 = arith.constant 5 : index
    %61 = memref.load %arg0[%c5_11] : memref<6xi32, #tpu.memory_space<smem>>
    %62 = vector.broadcast %61 : i32 to vector<16x1xi32>
    %63 = arith.cmpi eq, %1, %62 : vector<16x1xi32>
    %64 = arith.extui %63 : vector<16x1xi1> to vector<16x1xi32>
    %c4_i32_12 = arith.constant 4 : i32
    %65 = arith.subi %60, %c4_i32_12 : i32
    %66 = vector.broadcast %65 : i32 to vector<16x1xi32>
    %67 = arith.muli %64, %66 : vector<16x1xi32>
    %68 = arith.addi %57, %67 : vector<16x1xi32>
    %c4_i32_13 = arith.constant 4 : i32
    %69 = vector.broadcast %c4_i32_13 : i32 to vector<16x1xi32>
    %70 = arith.addi %69, %68 : vector<16x1xi32>
    %cst = arith.constant dense<0xFF800000> : vector<16xf32>
    %71 = vector.multi_reduction <maximumf>, %0, %cst [1] : vector<16x5xf32> to vector<16xf32>
    %72 = vector.shape_cast %71 : vector<16xf32> to vector<16x1xf32>
    %73 = vector.broadcast %72 : vector<16x1xf32> to vector<16x5xf32>
    %74 = arith.subf %0, %73 : vector<16x5xf32>
    %75 = math.exp %74 : vector<16x5xf32>
    %cst_14 = arith.constant dense<0.000000e+00> : vector<16xf32>
    %76 = vector.multi_reduction <add>, %75, %cst_14 [1] : vector<16x5xf32> to vector<16xf32>
    %77 = vector.shape_cast %76 : vector<16xf32> to vector<16x1xf32>
    %78 = math.log %77 : vector<16x1xf32>
    %79 = arith.addf %78, %72 : vector<16x1xf32>
    %80 = tpu.iota {dimensions = array<i32: 1>} : vector<16x5xi32>
    %81 = vector.broadcast %70 : vector<16x1xi32> to vector<16x5xi32>
    %82 = arith.cmpi eq, %80, %81 : vector<16x5xi32>
    %83 = arith.extui %82 : vector<16x5xi1> to vector<16x5xi32>
    %84 = arith.sitofp %83 : vector<16x5xi32> to vector<16x5xf32>
    %85 = arith.mulf %0, %84 : vector<16x5xf32>
    %cst_15 = arith.constant dense<0.000000e+00> : vector<16xf32>
    %86 = vector.multi_reduction <add>, %85, %cst_15 [1] : vector<16x5xf32> to vector<16xf32>
    %87 = vector.shape_cast %86 : vector<16xf32> to vector<16x1xf32>
    %88 = arith.subf %79, %87 : vector<16x1xf32>
    %c4_i32_16 = arith.constant 4 : i32
    %89 = vector.broadcast %c4_i32_16 : i32 to vector<16x1xi32>
    %90 = arith.cmpi ne, %70, %89 : vector<16x1xi32>
    %91 = arith.extui %90 : vector<16x1xi1> to vector<16x1xi32>
    %92 = arith.sitofp %91 : vector<16x1xi32> to vector<16x1xf32>
    %93 = arith.mulf %88, %92 : vector<16x1xf32>
    %94 = vector.shape_cast %93 : vector<16x1xf32> to vector<1x16x1xf32>
    %cst_17 = arith.constant dense<0.000000e+00> : vector<1xf32>
    %95 = vector.multi_reduction <add>, %94, %cst_17 [1, 2] : vector<1x16x1xf32> to vector<1xf32>
    %96 = vector.shape_cast %95 : vector<1xf32> to vector<1x1x1xf32>
    %97 = vector.extract %96[0, 0, 0] : f32 from vector<1x1x1xf32>
    %98 = vector.shape_cast %92 : vector<16x1xf32> to vector<1x16x1xf32>
    %cst_18 = arith.constant dense<0.000000e+00> : vector<1xf32>
    %99 = vector.multi_reduction <add>, %98, %cst_18 [1, 2] : vector<1x16x1xf32> to vector<1xf32>
    %100 = vector.shape_cast %99 : vector<1xf32> to vector<1x1x1xf32>
    %101 = vector.extract %100[0, 0, 0] : f32 from vector<1x1x1xf32>
    %102 = arith.divf %97, %101 : f32
    %c0_19 = arith.constant 0 : index
    %103 = memref.load %arg0[%c0_19] : memref<6xi32, #tpu.memory_space<smem>>
    %c0_20 = arith.constant 0 : index
    %104 = memref.load %arg1[%c0_20] : memref<6xi32, #tpu.memory_space<smem>>
    %105 = arith.index_cast %103 : i32 to index
    %c0_21 = arith.constant 0 : index
    %106 = memref.load %arg4[%105, %c0_21] : memref<16x4xf32, #tpu.memory_space<smem>>
    %107 = arith.index_cast %103 : i32 to index
    %c1_22 = arith.constant 1 : index
    %108 = memref.load %arg4[%107, %c1_22] : memref<16x4xf32, #tpu.memory_space<smem>>
    %109 = arith.index_cast %103 : i32 to index
    %c2_23 = arith.constant 2 : index
    %110 = memref.load %arg4[%109, %c2_23] : memref<16x4xf32, #tpu.memory_space<smem>>
    %111 = arith.index_cast %103 : i32 to index
    %c3_24 = arith.constant 3 : index
    %112 = memref.load %arg4[%111, %c3_24] : memref<16x4xf32, #tpu.memory_space<smem>>
    %113 = arith.index_cast %104 : i32 to index
    %c0_25 = arith.constant 0 : index
    %114 = memref.load %arg5[%113, %c0_25] : memref<6x4xf32, #tpu.memory_space<smem>>
    %115 = arith.index_cast %104 : i32 to index
    %c1_26 = arith.constant 1 : index
    %116 = memref.load %arg5[%115, %c1_26] : memref<6x4xf32, #tpu.memory_space<smem>>
    %117 = arith.index_cast %104 : i32 to index
    %c2_27 = arith.constant 2 : index
    %118 = memref.load %arg5[%117, %c2_27] : memref<6x4xf32, #tpu.memory_space<smem>>
    %119 = arith.index_cast %104 : i32 to index
    %c3_28 = arith.constant 3 : index
    %120 = memref.load %arg5[%119, %c3_28] : memref<6x4xf32, #tpu.memory_space<smem>>
    %121 = arith.subf %106, %114 : f32
    %122 = math.absf %121 : f32
    %123 = arith.subf %108, %116 : f32
    %124 = math.absf %123 : f32
    %125 = arith.addf %122, %124 : f32
    %126 = arith.subf %110, %118 : f32
    %127 = math.absf %126 : f32
    %128 = arith.addf %125, %127 : f32
    %129 = arith.subf %112, %120 : f32
    %130 = math.absf %129 : f32
    %131 = arith.addf %128, %130 : f32
    %cst_29 = arith.constant 0.000000e+00 : f32
    %132 = arith.addf %cst_29, %131 : f32
    %133 = arith.subf %110, %106 : f32
    %134 = arith.subf %112, %108 : f32
    %135 = arith.mulf %133, %134 : f32
    %136 = arith.subf %118, %114 : f32
    %137 = arith.subf %120, %116 : f32
    %138 = arith.mulf %136, %137 : f32
    %139 = arith.minimumf %110, %118 : f32
    %140 = arith.maximumf %106, %114 : f32
    %141 = arith.subf %139, %140 : f32
    %cst_30 = arith.constant 0.000000e+00 : f32
    %142 = arith.maximumf %141, %cst_30 : f32
    %143 = arith.minimumf %112, %120 : f32
    %144 = arith.maximumf %108, %116 : f32
    %145 = arith.subf %143, %144 : f32
    %cst_31 = arith.constant 0.000000e+00 : f32
    %146 = arith.maximumf %145, %cst_31 : f32
    %147 = arith.mulf %142, %146 : f32
    %148 = arith.addf %135, %138 : f32
    %149 = arith.subf %148, %147 : f32
    %150 = arith.divf %147, %149 : f32
    %151 = arith.maximumf %110, %118 : f32
    %152 = arith.minimumf %106, %114 : f32
    %153 = arith.subf %151, %152 : f32
    %cst_32 = arith.constant 0.000000e+00 : f32
    %154 = arith.maximumf %153, %cst_32 : f32
    %155 = arith.maximumf %112, %120 : f32
    %156 = arith.minimumf %108, %116 : f32
    %157 = arith.subf %155, %156 : f32
    %cst_33 = arith.constant 0.000000e+00 : f32
    %158 = arith.maximumf %157, %cst_33 : f32
    %159 = arith.mulf %154, %158 : f32
    %160 = arith.subf %159, %149 : f32
    %161 = arith.divf %160, %159 : f32
    %162 = arith.subf %150, %161 : f32
    %cst_34 = arith.constant 1.000000e+00 : f32
    %163 = arith.subf %cst_34, %162 : f32
    %cst_35 = arith.constant 0.000000e+00 : f32
    %164 = arith.addf %cst_35, %163 : f32
    %c1_36 = arith.constant 1 : index
    %165 = memref.load %arg0[%c1_36] : memref<6xi32, #tpu.memory_space<smem>>
    %c1_37 = arith.constant 1 : index
    %166 = memref.load %arg1[%c1_37] : memref<6xi32, #tpu.memory_space<smem>>
    %167 = arith.index_cast %165 : i32 to index
    %c0_38 = arith.constant 0 : index
    %168 = memref.load %arg4[%167, %c0_38] : memref<16x4xf32, #tpu.memory_space<smem>>
    %169 = arith.index_cast %165 : i32 to index
    %c1_39 = arith.constant 1 : index
    %170 = memref.load %arg4[%169, %c1_39] : memref<16x4xf32, #tpu.memory_space<smem>>
    %171 = arith.index_cast %165 : i32 to index
    %c2_40 = arith.constant 2 : index
    %172 = memref.load %arg4[%171, %c2_40] : memref<16x4xf32, #tpu.memory_space<smem>>
    %173 = arith.index_cast %165 : i32 to index
    %c3_41 = arith.constant 3 : index
    %174 = memref.load %arg4[%173, %c3_41] : memref<16x4xf32, #tpu.memory_space<smem>>
    %175 = arith.index_cast %166 : i32 to index
    %c0_42 = arith.constant 0 : index
    %176 = memref.load %arg5[%175, %c0_42] : memref<6x4xf32, #tpu.memory_space<smem>>
    %177 = arith.index_cast %166 : i32 to index
    %c1_43 = arith.constant 1 : index
    %178 = memref.load %arg5[%177, %c1_43] : memref<6x4xf32, #tpu.memory_space<smem>>
    %179 = arith.index_cast %166 : i32 to index
    %c2_44 = arith.constant 2 : index
    %180 = memref.load %arg5[%179, %c2_44] : memref<6x4xf32, #tpu.memory_space<smem>>
    %181 = arith.index_cast %166 : i32 to index
    %c3_45 = arith.constant 3 : index
    %182 = memref.load %arg5[%181, %c3_45] : memref<6x4xf32, #tpu.memory_space<smem>>
    %183 = arith.subf %168, %176 : f32
    %184 = math.absf %183 : f32
    %185 = arith.subf %170, %178 : f32
    %186 = math.absf %185 : f32
    %187 = arith.addf %184, %186 : f32
    %188 = arith.subf %172, %180 : f32
    %189 = math.absf %188 : f32
    %190 = arith.addf %187, %189 : f32
    %191 = arith.subf %174, %182 : f32
    %192 = math.absf %191 : f32
    %193 = arith.addf %190, %192 : f32
    %194 = arith.addf %132, %193 : f32
    %195 = arith.subf %172, %168 : f32
    %196 = arith.subf %174, %170 : f32
    %197 = arith.mulf %195, %196 : f32
    %198 = arith.subf %180, %176 : f32
    %199 = arith.subf %182, %178 : f32
    %200 = arith.mulf %198, %199 : f32
    %201 = arith.minimumf %172, %180 : f32
    %202 = arith.maximumf %168, %176 : f32
    %203 = arith.subf %201, %202 : f32
    %cst_46 = arith.constant 0.000000e+00 : f32
    %204 = arith.maximumf %203, %cst_46 : f32
    %205 = arith.minimumf %174, %182 : f32
    %206 = arith.maximumf %170, %178 : f32
    %207 = arith.subf %205, %206 : f32
    %cst_47 = arith.constant 0.000000e+00 : f32
    %208 = arith.maximumf %207, %cst_47 : f32
    %209 = arith.mulf %204, %208 : f32
    %210 = arith.addf %197, %200 : f32
    %211 = arith.subf %210, %209 : f32
    %212 = arith.divf %209, %211 : f32
    %213 = arith.maximumf %172, %180 : f32
    %214 = arith.minimumf %168, %176 : f32
    %215 = arith.subf %213, %214 : f32
    %cst_48 = arith.constant 0.000000e+00 : f32
    %216 = arith.maximumf %215, %cst_48 : f32
    %217 = arith.maximumf %174, %182 : f32
    %218 = arith.minimumf %170, %178 : f32
    %219 = arith.subf %217, %218 : f32
    %cst_49 = arith.constant 0.000000e+00 : f32
    %220 = arith.maximumf %219, %cst_49 : f32
    %221 = arith.mulf %216, %220 : f32
    %222 = arith.subf %221, %211 : f32
    %223 = arith.divf %222, %221 : f32
    %224 = arith.subf %212, %223 : f32
    %cst_50 = arith.constant 1.000000e+00 : f32
    %225 = arith.subf %cst_50, %224 : f32
    %226 = arith.addf %164, %225 : f32
    %c2_51 = arith.constant 2 : index
    %227 = memref.load %arg0[%c2_51] : memref<6xi32, #tpu.memory_space<smem>>
    %c2_52 = arith.constant 2 : index
    %228 = memref.load %arg1[%c2_52] : memref<6xi32, #tpu.memory_space<smem>>
    %229 = arith.index_cast %227 : i32 to index
    %c0_53 = arith.constant 0 : index
    %230 = memref.load %arg4[%229, %c0_53] : memref<16x4xf32, #tpu.memory_space<smem>>
    %231 = arith.index_cast %227 : i32 to index
    %c1_54 = arith.constant 1 : index
    %232 = memref.load %arg4[%231, %c1_54] : memref<16x4xf32, #tpu.memory_space<smem>>
    %233 = arith.index_cast %227 : i32 to index
    %c2_55 = arith.constant 2 : index
    %234 = memref.load %arg4[%233, %c2_55] : memref<16x4xf32, #tpu.memory_space<smem>>
    %235 = arith.index_cast %227 : i32 to index
    %c3_56 = arith.constant 3 : index
    %236 = memref.load %arg4[%235, %c3_56] : memref<16x4xf32, #tpu.memory_space<smem>>
    %237 = arith.index_cast %228 : i32 to index
    %c0_57 = arith.constant 0 : index
    %238 = memref.load %arg5[%237, %c0_57] : memref<6x4xf32, #tpu.memory_space<smem>>
    %239 = arith.index_cast %228 : i32 to index
    %c1_58 = arith.constant 1 : index
    %240 = memref.load %arg5[%239, %c1_58] : memref<6x4xf32, #tpu.memory_space<smem>>
    %241 = arith.index_cast %228 : i32 to index
    %c2_59 = arith.constant 2 : index
    %242 = memref.load %arg5[%241, %c2_59] : memref<6x4xf32, #tpu.memory_space<smem>>
    %243 = arith.index_cast %228 : i32 to index
    %c3_60 = arith.constant 3 : index
    %244 = memref.load %arg5[%243, %c3_60] : memref<6x4xf32, #tpu.memory_space<smem>>
    %245 = arith.subf %230, %238 : f32
    %246 = math.absf %245 : f32
    %247 = arith.subf %232, %240 : f32
    %248 = math.absf %247 : f32
    %249 = arith.addf %246, %248 : f32
    %250 = arith.subf %234, %242 : f32
    %251 = math.absf %250 : f32
    %252 = arith.addf %249, %251 : f32
    %253 = arith.subf %236, %244 : f32
    %254 = math.absf %253 : f32
    %255 = arith.addf %252, %254 : f32
    %256 = arith.addf %194, %255 : f32
    %257 = arith.subf %234, %230 : f32
    %258 = arith.subf %236, %232 : f32
    %259 = arith.mulf %257, %258 : f32
    %260 = arith.subf %242, %238 : f32
    %261 = arith.subf %244, %240 : f32
    %262 = arith.mulf %260, %261 : f32
    %263 = arith.minimumf %234, %242 : f32
    %264 = arith.maximumf %230, %238 : f32
    %265 = arith.subf %263, %264 : f32
    %cst_61 = arith.constant 0.000000e+00 : f32
    %266 = arith.maximumf %265, %cst_61 : f32
    %267 = arith.minimumf %236, %244 : f32
    %268 = arith.maximumf %232, %240 : f32
    %269 = arith.subf %267, %268 : f32
    %cst_62 = arith.constant 0.000000e+00 : f32
    %270 = arith.maximumf %269, %cst_62 : f32
    %271 = arith.mulf %266, %270 : f32
    %272 = arith.addf %259, %262 : f32
    %273 = arith.subf %272, %271 : f32
    %274 = arith.divf %271, %273 : f32
    %275 = arith.maximumf %234, %242 : f32
    %276 = arith.minimumf %230, %238 : f32
    %277 = arith.subf %275, %276 : f32
    %cst_63 = arith.constant 0.000000e+00 : f32
    %278 = arith.maximumf %277, %cst_63 : f32
    %279 = arith.maximumf %236, %244 : f32
    %280 = arith.minimumf %232, %240 : f32
    %281 = arith.subf %279, %280 : f32
    %cst_64 = arith.constant 0.000000e+00 : f32
    %282 = arith.maximumf %281, %cst_64 : f32
    %283 = arith.mulf %278, %282 : f32
    %284 = arith.subf %283, %273 : f32
    %285 = arith.divf %284, %283 : f32
    %286 = arith.subf %274, %285 : f32
    %cst_65 = arith.constant 1.000000e+00 : f32
    %287 = arith.subf %cst_65, %286 : f32
    %288 = arith.addf %226, %287 : f32
    %c3_66 = arith.constant 3 : index
    %289 = memref.load %arg0[%c3_66] : memref<6xi32, #tpu.memory_space<smem>>
    %c3_67 = arith.constant 3 : index
    %290 = memref.load %arg1[%c3_67] : memref<6xi32, #tpu.memory_space<smem>>
    %291 = arith.index_cast %289 : i32 to index
    %c0_68 = arith.constant 0 : index
    %292 = memref.load %arg4[%291, %c0_68] : memref<16x4xf32, #tpu.memory_space<smem>>
    %293 = arith.index_cast %289 : i32 to index
    %c1_69 = arith.constant 1 : index
    %294 = memref.load %arg4[%293, %c1_69] : memref<16x4xf32, #tpu.memory_space<smem>>
    %295 = arith.index_cast %289 : i32 to index
    %c2_70 = arith.constant 2 : index
    %296 = memref.load %arg4[%295, %c2_70] : memref<16x4xf32, #tpu.memory_space<smem>>
    %297 = arith.index_cast %289 : i32 to index
    %c3_71 = arith.constant 3 : index
    %298 = memref.load %arg4[%297, %c3_71] : memref<16x4xf32, #tpu.memory_space<smem>>
    %299 = arith.index_cast %290 : i32 to index
    %c0_72 = arith.constant 0 : index
    %300 = memref.load %arg5[%299, %c0_72] : memref<6x4xf32, #tpu.memory_space<smem>>
    %301 = arith.index_cast %290 : i32 to index
    %c1_73 = arith.constant 1 : index
    %302 = memref.load %arg5[%301, %c1_73] : memref<6x4xf32, #tpu.memory_space<smem>>
    %303 = arith.index_cast %290 : i32 to index
    %c2_74 = arith.constant 2 : index
    %304 = memref.load %arg5[%303, %c2_74] : memref<6x4xf32, #tpu.memory_space<smem>>
    %305 = arith.index_cast %290 : i32 to index
    %c3_75 = arith.constant 3 : index
    %306 = memref.load %arg5[%305, %c3_75] : memref<6x4xf32, #tpu.memory_space<smem>>
    %307 = arith.subf %292, %300 : f32
    %308 = math.absf %307 : f32
    %309 = arith.subf %294, %302 : f32
    %310 = math.absf %309 : f32
    %311 = arith.addf %308, %310 : f32
    %312 = arith.subf %296, %304 : f32
    %313 = math.absf %312 : f32
    %314 = arith.addf %311, %313 : f32
    %315 = arith.subf %298, %306 : f32
    %316 = math.absf %315 : f32
    %317 = arith.addf %314, %316 : f32
    %318 = arith.addf %256, %317 : f32
    %319 = arith.subf %296, %292 : f32
    %320 = arith.subf %298, %294 : f32
    %321 = arith.mulf %319, %320 : f32
    %322 = arith.subf %304, %300 : f32
    %323 = arith.subf %306, %302 : f32
    %324 = arith.mulf %322, %323 : f32
    %325 = arith.minimumf %296, %304 : f32
    %326 = arith.maximumf %292, %300 : f32
    %327 = arith.subf %325, %326 : f32
    %cst_76 = arith.constant 0.000000e+00 : f32
    %328 = arith.maximumf %327, %cst_76 : f32
    %329 = arith.minimumf %298, %306 : f32
    %330 = arith.maximumf %294, %302 : f32
    %331 = arith.subf %329, %330 : f32
    %cst_77 = arith.constant 0.000000e+00 : f32
    %332 = arith.maximumf %331, %cst_77 : f32
    %333 = arith.mulf %328, %332 : f32
    %334 = arith.addf %321, %324 : f32
    %335 = arith.subf %334, %333 : f32
    %336 = arith.divf %333, %335 : f32
    %337 = arith.maximumf %296, %304 : f32
    %338 = arith.minimumf %292, %300 : f32
    %339 = arith.subf %337, %338 : f32
    %cst_78 = arith.constant 0.000000e+00 : f32
    %340 = arith.maximumf %339, %cst_78 : f32
    %341 = arith.maximumf %298, %306 : f32
    %342 = arith.minimumf %294, %302 : f32
    %343 = arith.subf %341, %342 : f32
    %cst_79 = arith.constant 0.000000e+00 : f32
    %344 = arith.maximumf %343, %cst_79 : f32
    %345 = arith.mulf %340, %344 : f32
    %346 = arith.subf %345, %335 : f32
    %347 = arith.divf %346, %345 : f32
    %348 = arith.subf %336, %347 : f32
    %cst_80 = arith.constant 1.000000e+00 : f32
    %349 = arith.subf %cst_80, %348 : f32
    %350 = arith.addf %288, %349 : f32
    %c4_81 = arith.constant 4 : index
    %351 = memref.load %arg0[%c4_81] : memref<6xi32, #tpu.memory_space<smem>>
    %c4_82 = arith.constant 4 : index
    %352 = memref.load %arg1[%c4_82] : memref<6xi32, #tpu.memory_space<smem>>
    %353 = arith.index_cast %351 : i32 to index
    %c0_83 = arith.constant 0 : index
    %354 = memref.load %arg4[%353, %c0_83] : memref<16x4xf32, #tpu.memory_space<smem>>
    %355 = arith.index_cast %351 : i32 to index
    %c1_84 = arith.constant 1 : index
    %356 = memref.load %arg4[%355, %c1_84] : memref<16x4xf32, #tpu.memory_space<smem>>
    %357 = arith.index_cast %351 : i32 to index
    %c2_85 = arith.constant 2 : index
    %358 = memref.load %arg4[%357, %c2_85] : memref<16x4xf32, #tpu.memory_space<smem>>
    %359 = arith.index_cast %351 : i32 to index
    %c3_86 = arith.constant 3 : index
    %360 = memref.load %arg4[%359, %c3_86] : memref<16x4xf32, #tpu.memory_space<smem>>
    %361 = arith.index_cast %352 : i32 to index
    %c0_87 = arith.constant 0 : index
    %362 = memref.load %arg5[%361, %c0_87] : memref<6x4xf32, #tpu.memory_space<smem>>
    %363 = arith.index_cast %352 : i32 to index
    %c1_88 = arith.constant 1 : index
    %364 = memref.load %arg5[%363, %c1_88] : memref<6x4xf32, #tpu.memory_space<smem>>
    %365 = arith.index_cast %352 : i32 to index
    %c2_89 = arith.constant 2 : index
    %366 = memref.load %arg5[%365, %c2_89] : memref<6x4xf32, #tpu.memory_space<smem>>
    %367 = arith.index_cast %352 : i32 to index
    %c3_90 = arith.constant 3 : index
    %368 = memref.load %arg5[%367, %c3_90] : memref<6x4xf32, #tpu.memory_space<smem>>
    %369 = arith.subf %354, %362 : f32
    %370 = math.absf %369 : f32
    %371 = arith.subf %356, %364 : f32
    %372 = math.absf %371 : f32
    %373 = arith.addf %370, %372 : f32
    %374 = arith.subf %358, %366 : f32
    %375 = math.absf %374 : f32
    %376 = arith.addf %373, %375 : f32
    %377 = arith.subf %360, %368 : f32
    %378 = math.absf %377 : f32
    %379 = arith.addf %376, %378 : f32
    %380 = arith.addf %318, %379 : f32
    %381 = arith.subf %358, %354 : f32
    %382 = arith.subf %360, %356 : f32
    %383 = arith.mulf %381, %382 : f32
    %384 = arith.subf %366, %362 : f32
    %385 = arith.subf %368, %364 : f32
    %386 = arith.mulf %384, %385 : f32
    %387 = arith.minimumf %358, %366 : f32
    %388 = arith.maximumf %354, %362 : f32
    %389 = arith.subf %387, %388 : f32
    %cst_91 = arith.constant 0.000000e+00 : f32
    %390 = arith.maximumf %389, %cst_91 : f32
    %391 = arith.minimumf %360, %368 : f32
    %392 = arith.maximumf %356, %364 : f32
    %393 = arith.subf %391, %392 : f32
    %cst_92 = arith.constant 0.000000e+00 : f32
    %394 = arith.maximumf %393, %cst_92 : f32
    %395 = arith.mulf %390, %394 : f32
    %396 = arith.addf %383, %386 : f32
    %397 = arith.subf %396, %395 : f32
    %398 = arith.divf %395, %397 : f32
    %399 = arith.maximumf %358, %366 : f32
    %400 = arith.minimumf %354, %362 : f32
    %401 = arith.subf %399, %400 : f32
    %cst_93 = arith.constant 0.000000e+00 : f32
    %402 = arith.maximumf %401, %cst_93 : f32
    %403 = arith.maximumf %360, %368 : f32
    %404 = arith.minimumf %356, %364 : f32
    %405 = arith.subf %403, %404 : f32
    %cst_94 = arith.constant 0.000000e+00 : f32
    %406 = arith.maximumf %405, %cst_94 : f32
    %407 = arith.mulf %402, %406 : f32
    %408 = arith.subf %407, %397 : f32
    %409 = arith.divf %408, %407 : f32
    %410 = arith.subf %398, %409 : f32
    %cst_95 = arith.constant 1.000000e+00 : f32
    %411 = arith.subf %cst_95, %410 : f32
    %412 = arith.addf %350, %411 : f32
    %c5_96 = arith.constant 5 : index
    %413 = memref.load %arg0[%c5_96] : memref<6xi32, #tpu.memory_space<smem>>
    %c5_97 = arith.constant 5 : index
    %414 = memref.load %arg1[%c5_97] : memref<6xi32, #tpu.memory_space<smem>>
    %415 = arith.index_cast %413 : i32 to index
    %c0_98 = arith.constant 0 : index
    %416 = memref.load %arg4[%415, %c0_98] : memref<16x4xf32, #tpu.memory_space<smem>>
    %417 = arith.index_cast %413 : i32 to index
    %c1_99 = arith.constant 1 : index
    %418 = memref.load %arg4[%417, %c1_99] : memref<16x4xf32, #tpu.memory_space<smem>>
    %419 = arith.index_cast %413 : i32 to index
    %c2_100 = arith.constant 2 : index
    %420 = memref.load %arg4[%419, %c2_100] : memref<16x4xf32, #tpu.memory_space<smem>>
    %421 = arith.index_cast %413 : i32 to index
    %c3_101 = arith.constant 3 : index
    %422 = memref.load %arg4[%421, %c3_101] : memref<16x4xf32, #tpu.memory_space<smem>>
    %423 = arith.index_cast %414 : i32 to index
    %c0_102 = arith.constant 0 : index
    %424 = memref.load %arg5[%423, %c0_102] : memref<6x4xf32, #tpu.memory_space<smem>>
    %425 = arith.index_cast %414 : i32 to index
    %c1_103 = arith.constant 1 : index
    %426 = memref.load %arg5[%425, %c1_103] : memref<6x4xf32, #tpu.memory_space<smem>>
    %427 = arith.index_cast %414 : i32 to index
    %c2_104 = arith.constant 2 : index
    %428 = memref.load %arg5[%427, %c2_104] : memref<6x4xf32, #tpu.memory_space<smem>>
    %429 = arith.index_cast %414 : i32 to index
    %c3_105 = arith.constant 3 : index
    %430 = memref.load %arg5[%429, %c3_105] : memref<6x4xf32, #tpu.memory_space<smem>>
    %431 = arith.subf %416, %424 : f32
    %432 = math.absf %431 : f32
    %433 = arith.subf %418, %426 : f32
    %434 = math.absf %433 : f32
    %435 = arith.addf %432, %434 : f32
    %436 = arith.subf %420, %428 : f32
    %437 = math.absf %436 : f32
    %438 = arith.addf %435, %437 : f32
    %439 = arith.subf %422, %430 : f32
    %440 = math.absf %439 : f32
    %441 = arith.addf %438, %440 : f32
    %442 = arith.addf %380, %441 : f32
    %443 = arith.subf %420, %416 : f32
    %444 = arith.subf %422, %418 : f32
    %445 = arith.mulf %443, %444 : f32
    %446 = arith.subf %428, %424 : f32
    %447 = arith.subf %430, %426 : f32
    %448 = arith.mulf %446, %447 : f32
    %449 = arith.minimumf %420, %428 : f32
    %450 = arith.maximumf %416, %424 : f32
    %451 = arith.subf %449, %450 : f32
    %cst_106 = arith.constant 0.000000e+00 : f32
    %452 = arith.maximumf %451, %cst_106 : f32
    %453 = arith.minimumf %422, %430 : f32
    %454 = arith.maximumf %418, %426 : f32
    %455 = arith.subf %453, %454 : f32
    %cst_107 = arith.constant 0.000000e+00 : f32
    %456 = arith.maximumf %455, %cst_107 : f32
    %457 = arith.mulf %452, %456 : f32
    %458 = arith.addf %445, %448 : f32
    %459 = arith.subf %458, %457 : f32
    %460 = arith.divf %457, %459 : f32
    %461 = arith.maximumf %420, %428 : f32
    %462 = arith.minimumf %416, %424 : f32
    %463 = arith.subf %461, %462 : f32
    %cst_108 = arith.constant 0.000000e+00 : f32
    %464 = arith.maximumf %463, %cst_108 : f32
    %465 = arith.maximumf %422, %430 : f32
    %466 = arith.minimumf %418, %426 : f32
    %467 = arith.subf %465, %466 : f32
    %cst_109 = arith.constant 0.000000e+00 : f32
    %468 = arith.maximumf %467, %cst_109 : f32
    %469 = arith.mulf %464, %468 : f32
    %470 = arith.subf %469, %459 : f32
    %471 = arith.divf %470, %469 : f32
    %472 = arith.subf %460, %471 : f32
    %cst_110 = arith.constant 1.000000e+00 : f32
    %473 = arith.subf %cst_110, %472 : f32
    %474 = arith.addf %412, %473 : f32
    %cst_111 = arith.constant 0.166666672 : f32
    %475 = arith.mulf %442, %cst_111 : f32
    %cst_112 = arith.constant 0.166666672 : f32
    %476 = arith.mulf %474, %cst_112 : f32
    %477 = tpu.iota {dimensions = array<i32: 1>} : vector<1x128xi32>
    %c0_i32_113 = arith.constant 0 : i32
    %478 = vector.broadcast %c0_i32_113 : i32 to vector<1x128xi32>
    %479 = arith.cmpi eq, %477, %478 : vector<1x128xi32>
    %c1_i32 = arith.constant 1 : i32
    %480 = vector.broadcast %c1_i32 : i32 to vector<1x128xi32>
    %481 = arith.cmpi eq, %477, %480 : vector<1x128xi32>
    %c2_i32 = arith.constant 2 : i32
    %482 = vector.broadcast %c2_i32 : i32 to vector<1x128xi32>
    %483 = arith.cmpi eq, %477, %482 : vector<1x128xi32>
    %cst_114 = arith.constant 0.000000e+00 : f32
    %484 = vector.broadcast %476 : f32 to vector<1x128xf32>
    %485 = vector.broadcast %cst_114 : f32 to vector<1x128xf32>
    %486 = arith.select %483, %484, %485 : vector<1x128xi1>, vector<1x128xf32>
    %487 = vector.broadcast %475 : f32 to vector<1x128xf32>
    %488 = arith.select %481, %487, %486 : vector<1x128xi1>, vector<1x128xf32>
    %489 = vector.broadcast %102 : f32 to vector<1x128xf32>
    %490 = arith.select %479, %489, %488 : vector<1x128xi1>, vector<1x128xf32>
    %c0_115 = arith.constant 0 : index
    %c0_116 = arith.constant 0 : index
    %491 = vector.load %arg6[%c0_115, %c0_116] : memref<1x128xf32, #tpu.memory_space<vmem>>, vector<1x128xf32>
    tpu.vector_store %arg6[%c0_115, %c0_116], %490 {strides = array<i32>} : memref<1x128xf32, #tpu.memory_space<vmem>>, vector<1x128xf32>,
    return
  }
}

</mosaic_0001>

<llo_original>
// kernel: tpu_custom_call.1
$region0: #{tpu_custom_call.1}
  #allocation0 [shape = 'u32[]', space=smem, size = 0x4, offset = 0x4, fixed_abs, tag = 'smem constant byte address 0x4 - core index']
  #allocation1 [shape = 'u32[144,128]{1,0:T(1,128)}', space=vmem, size = 0x12000, scoped, tag = 'internal scratch']
  %s0 = inlined_call_operand.vmem [shape: s32[6], index: 0, kind: input, shape index: {}]
  %s1 = inlined_call_operand.vmem [shape: s32[6], index: 1, kind: input, shape index: {}]
  %s2 = inlined_call_operand.vmem [shape: s32[6], index: 2, kind: input, shape index: {}]
  %s3 = inlined_call_operand.vmem [shape: f32[16,5], index: 3, kind: input, shape index: {}]
  %s4 = inlined_call_operand.vmem [shape: f32[16,4], index: 4, kind: input, shape index: {}]
  %s5 = inlined_call_operand.vmem [shape: f32[6,4], index: 5, kind: input, shape index: {}]
  %s6 = inlined_call_operand.hbm [shape: f32[1,128], index: 6, kind: output, shape index: {}]
  %s7 = sld [smem:[#allocation0]]
  $region54: #{tpu_custom_call.1} parent=0
    _
  %s9 = ssub.s32 1, %s7
  %s10 = scalar_select 0, %s9, %s7
  $region1: #{tpu_custom_call.1} parent=0
    #allocation2 [shape = 'u8[512]{0}', space=smem, size = 0x200, scoped, tag = 'input window, operand 0, single buffered']
    #allocation3 [shape = 's32[1]{0}', space=sflag, size = 0x4, scoped, tag = 'scoped memory for tpu_custom_call.1']
    #allocation4 [shape = 's32[1]{0}', space=sflag, size = 0x4, scoped, tag = 'scoped memory for tpu_custom_call.1']
    #allocation5 [shape = 'u8[512]{0}', space=smem, size = 0x200, scoped, tag = 'input window, operand 1, single buffered']
    #allocation6 [shape = 's32[1]{0}', space=sflag, size = 0x4, scoped, tag = 'scoped memory for tpu_custom_call.1']
    #allocation7 [shape = 'u8[512]{0}', space=smem, size = 0x200, scoped, tag = 'input window, operand 2, single buffered']
    #allocation8 [shape = 'u8[8192]{0}', space=smem, size = 0x2000, scoped, tag = 'input window, operand 4, single buffered']
    #allocation9 [shape = 's32[1]{0}', space=sflag, size = 0x4, scoped, tag = 'scoped memory for tpu_custom_call.1']
    #allocation10 [shape = 'u8[4096]{0}', space=smem, size = 0x1000, scoped, tag = 'input window, operand 5, single buffered']
    #allocation11 [shape = 'u8[512]{0}', space=vmem, size = 0x400, scoped, tag = 'output window, operand 0, single buffered']
    %11 = vsyncpa [#allocation4], 0
    %12 = vsyncpa [#allocation6], 0
    %13 = vsyncpa [#allocation9], 0
    %14 = vsyncpa [#allocation3], 0
    // Predicated region
    $region2: #{tpu_custom_call.1} parent=1 // pred_check
      _
    $region3: #{tpu_custom_call.1} parent=1 // pred_check_branch
      %16 = sbr.rel (0) target = $region5
    $region4: #{tpu_custom_call.1} parent=1 // pred_region
      %s18 = ssub.s32 16, 16
      %19 = vsyncadd [#allocation4], %s18
      %s21 = sshll.u32 %s0, 4
      %s22 = int_to_ptr.vmem [resolvable:$true] %s21
      %24 = dma.vmem_to_smem %s22, 16, [#allocation2], [#allocation4]
    $region5: #{tpu_custom_call.1} parent=1 // pred_fallthru
      _
    // Predicated region
    $region6: #{tpu_custom_call.1} parent=1 // pred_check
      _
    $region7: #{tpu_custom_call.1} parent=1 // pred_check_branch
      %26 = sbr.rel (0) target = $region9
    $region8: #{tpu_custom_call.1} parent=1 // pred_region
      %s28 = ssub.s32 16, 16
      %29 = vsyncadd [#allocation6], %s28
      %s31 = sshll.u32 %s1, 4
      %s32 = int_to_ptr.vmem [resolvable:$true] %s31
      %34 = dma.vmem_to_smem %s32, 16, [#allocation5], [#allocation6]
    $region9: #{tpu_custom_call.1} parent=1 // pred_fallthru
      _
    // Predicated region
    $region10: #{tpu_custom_call.1} parent=1 // pred_check
      _
    $region11: #{tpu_custom_call.1} parent=1 // pred_check_branch
      %36 = sbr.rel (0) target = $region13
    $region12: #{tpu_custom_call.1} parent=1 // pred_region
      %s38 = ssub.s32 16, 16
      %39 = vsyncadd [#allocation6], %s38
      %s41 = sshll.u32 %s2, 4
      %s42 = int_to_ptr.vmem [resolvable:$true] %s41
      %44 = dma.vmem_to_smem %s42, 16, [#allocation7], [#allocation6]
    $region13: #{tpu_custom_call.1} parent=1 // pred_fallthru
      _
    // Predicated region
    $region14: #{tpu_custom_call.1} parent=1 // pred_check
      _
    $region15: #{tpu_custom_call.1} parent=1 // pred_check_branch
      %46 = sbr.rel (0) target = $region17
    $region16: #{tpu_custom_call.1} parent=1 // pred_region
      _
    $region17: #{tpu_custom_call.1} parent=1 // pred_fallthru
      _
    // Predicated region
    $region18: #{tpu_custom_call.1} parent=1 // pred_check
      _
    $region19: #{tpu_custom_call.1} parent=1 // pred_check_branch
      %48 = sbr.rel (0) target = $region21
    $region20: #{tpu_custom_call.1} parent=1 // pred_region
      %s50 = ssub.s32 256, 256
      %51 = vsyncadd [#allocation9], %s50
      %s52 = sshll.u32 %s4, 4
      %s53 = int_to_ptr.vmem [resolvable:$true] %s52
      %58 = dma.vmem_to_smem %s53, 256, [#allocation8], [#allocation9], 128, 128, 8
    $region21: #{tpu_custom_call.1} parent=1 // pred_fallthru
      _
    // Predicated region
    $region22: #{tpu_custom_call.1} parent=1 // pred_check
      _
    $region23: #{tpu_custom_call.1} parent=1 // pred_check_branch
      %60 = sbr.rel (0) target = $region25
    $region24: #{tpu_custom_call.1} parent=1 // pred_region
      %s62 = ssub.s32 128, 128
      %63 = vsyncadd [#allocation9], %s62
      %s65 = sshll.u32 %s5, 4
      %s66 = int_to_ptr.vmem [resolvable:$true] %s65
      %68 = dma.vmem_to_smem %s66, 128, [#allocation10], [#allocation9]
    $region25: #{tpu_custom_call.1} parent=1 // pred_fallthru
      _
    // Predicated region
    $region26: #{tpu_custom_call.1} parent=1 // pred_check
      _
    $region27: #{tpu_custom_call.1} parent=1 // pred_check_branch
      %70 = sbr.rel (0) target = $region29
    $region28: #{tpu_custom_call.1} parent=1 // pred_region
      %71 = dma.done [#allocation4], 16
    $region29: #{tpu_custom_call.1} parent=1 // pred_fallthru
      _
    // Predicated region
    $region30: #{tpu_custom_call.1} parent=1 // pred_check
      _
    $region31: #{tpu_custom_call.1} parent=1 // pred_check_branch
      %73 = sbr.rel (0) target = $region33
    $region32: #{tpu_custom_call.1} parent=1 // pred_region
      %74 = dma.done [#allocation6], 16
    $region33: #{tpu_custom_call.1} parent=1 // pred_fallthru
      _
    // Predicated region
    $region34: #{tpu_custom_call.1} parent=1 // pred_check
      _
    $region35: #{tpu_custom_call.1} parent=1 // pred_check_branch
      %76 = sbr.rel (0) target = $region37
    $region36: #{tpu_custom_call.1} parent=1 // pred_region
      %77 = dma.done [#allocation6], 16
    $region37: #{tpu_custom_call.1} parent=1 // pred_fallthru
      _
    // Predicated region
    $region38: #{tpu_custom_call.1} parent=1 // pred_check
      _
    $region39: #{tpu_custom_call.1} parent=1 // pred_check_branch
      %79 = sbr.rel (0) target = $region41
    $region40: #{tpu_custom_call.1} parent=1 // pred_region
      %80 = dma.done [#allocation9], 256
    $region41: #{tpu_custom_call.1} parent=1 // pred_fallthru
      _
    // Predicated region
    $region42: #{tpu_custom_call.1} parent=1 // pred_check
      _
    $region43: #{tpu_custom_call.1} parent=1 // pred_check_branch
      %82 = sbr.rel (0) target = $region45
    $region44: #{tpu_custom_call.1} parent=1 // pred_region
      %83 = dma.done [#allocation9], 128
    $region45: #{tpu_custom_call.1} parent=1 // pred_fallthru
      _
    %84 = sfence
    %v85 = vld [vmem:[%s3] sm:$0xff]
    %v86 = vld [vmem:[%s3 + $0x8] sm:$0xff]
    %v87 = vlaneseq
    %v88 = vshrl.u32 %v87, 7
    %v89 = vadd.s32 %v88, 8
    %s90 = sld [smem:[#allocation5]]
    %s91 = sld [smem:[#allocation7 + %s90]]
    %s92 = sld [smem:[#allocation2]]
    %v93 = vstv %s92
    %vm94 = vcmp.eq.s32.totalorder %v88, %v93
    %vm95 = vcmp.eq.s32.totalorder %v89, %v93
    %v96 = vsel %vm94, 1, 0
    %v97 = vsel %vm95, 1, 0
    %s98 = ssub.s32 %s91, 4
    %v99 = vstv %s98
    %v100 = vmul.u32 %v96, %v99
    %v101 = vmul.u32 %v97, %v99
    %s102 = sld [smem:[#allocation5 + $0x1]]
    %s103 = sld [smem:[#allocation7 + %s102]]
    %s104 = sld [smem:[#allocation2 + $0x1]]
    %v105 = vstv %s104
    %vm106 = vcmp.eq.s32.totalorder %v88, %v105
    %vm107 = vcmp.eq.s32.totalorder %v89, %v105
    %v108 = vsel %vm106, 1, 0
    %v109 = vsel %vm107, 1, 0
    %s110 = ssub.s32 %s103, 4
    %v111 = vstv %s110
    %v112 = vmul.u32 %v108, %v111
    %v113 = vmul.u32 %v109, %v111
    %v114 = vadd.s32 %v100, %v112
    %v115 = vadd.s32 %v101, %v113
    %s116 = sld [smem:[#allocation5 + $0x2]]
    %s117 = sld [smem:[#allocation7 + %s116]]
    %s118 = sld [smem:[#allocation2 + $0x2]]
    %v119 = vstv %s118
    %vm120 = vcmp.eq.s32.totalorder %v88, %v119
    %vm121 = vcmp.eq.s32.totalorder %v89, %v119
    %v122 = vsel %vm120, 1, 0
    %v123 = vsel %vm121, 1, 0
    %s124 = ssub.s32 %s117, 4
    %v125 = vstv %s124
    %v126 = vmul.u32 %v122, %v125
    %v127 = vmul.u32 %v123, %v125
    %v128 = vadd.s32 %v114, %v126
    %v129 = vadd.s32 %v115, %v127
    %s130 = sld [smem:[#allocation5 + $0x3]]
    %s131 = sld [smem:[#allocation7 + %s130]]
    %s132 = sld [smem:[#allocation2 + $0x3]]
    %v133 = vstv %s132
    %vm134 = vcmp.eq.s32.totalorder %v88, %v133
    %vm135 = vcmp.eq.s32.totalorder %v89, %v133
    %v136 = vsel %vm134, 1, 0
    %v137 = vsel %vm135, 1, 0
    %s138 = ssub.s32 %s131, 4
    %v139 = vstv %s138
    %v140 = vmul.u32 %v136, %v139
    %v141 = vmul.u32 %v137, %v139
    %v142 = vadd.s32 %v128, %v140
    %v143 = vadd.s32 %v129, %v141
    %s144 = sld [smem:[#allocation5 + $0x4]]
    %s145 = sld [smem:[#allocation7 + %s144]]
    %s146 = sld [smem:[#allocation2 + $0x4]]
    %v147 = vstv %s146
    %vm148 = vcmp.eq.s32.totalorder %v88, %v147
    %vm149 = vcmp.eq.s32.totalorder %v89, %v147
    %v150 = vsel %vm148, 1, 0
    %v151 = vsel %vm149, 1, 0
    %s152 = ssub.s32 %s145, 4
    %v153 = vstv %s152
    %v154 = vmul.u32 %v150, %v153
    %v155 = vmul.u32 %v151, %v153
    %v156 = vadd.s32 %v142, %v154
    %v157 = vadd.s32 %v143, %v155
    %s158 = sld [smem:[#allocation5 + $0x5]]
    %s159 = sld [smem:[#allocation7 + %s158]]
    %s160 = sld [smem:[#allocation2 + $0x5]]
    %v161 = vstv %s160
    %vm162 = vcmp.eq.s32.totalorder %v88, %v161
    %vm163 = vcmp.eq.s32.totalorder %v89, %v161
    %v164 = vsel %vm162, 1, 0
    %v165 = vsel %vm163, 1, 0
    %s166 = ssub.s32 %s159, 4
    %v167 = vstv %s166
    %v168 = vmul.u32 %v164, %v167
    %v169 = vmul.u32 %v165, %v167
    %v170 = vadd.s32 %v156, %v168
    %v171 = vadd.s32 %v157, %v169
    %v172 = vadd.s32 %v170, 4
    %v173 = vadd.s32 %v171, 4
    %vm174 = vcmask 39936
    %v175 = vsel %vm174, %v85, -inf
    %176 = vmax.xlane.f32.xlu0 %v175
    %v177 = vpop.xlane.xlu0 %176
    %v178 = vsel %vm174, %v86, -inf
    %179 = vmax.xlane.f32.xlu0 %v178
    %v180 = vpop.xlane.xlu0 %179
    %v181 = vsub.f32 %v85, %v177
    %v182 = vsub.f32 %v86, %v180
    %v183 = vmul.f32 %v181, 1.442695
    %v184 = vpow.pop %v183
    %v185 = vmul.f32 %v182, 1.442695
    %v186 = vpow.pop %v185
    %v187 = vsel %vm174, %v184, 0.0
    %188 = vadd.xlane.f32.xlu0 %v187
    %v189 = vpop.xlane.xlu0 %188
    %v190 = vsel %vm174, %v186, 0.0
    %191 = vadd.xlane.f32.xlu0 %v190
    %v192 = vpop.xlane.xlu0 %191
    %v193 = vlog2.pop %v189
    %v194 = vmul.f32 %v193, 0.6931472
    %v195 = vlog2.pop %v192
    %v196 = vmul.f32 %v195, 0.6931472
    %v197 = vadd.f32 %v194, %v177
    %v198 = vadd.f32 %v196, %v180
    %v199 = vlaneseq
    %v200 = vand.u32 %v199, 127
    %vm201 = vcmp.eq.s32.totalorder %v200, %v172
    %vm202 = vcmp.eq.s32.totalorder %v200, %v173
    %v203 = vsel %vm201, 1, 0
    %v204 = vsel %vm202, 1, 0
    %v205 = vcvt.s32.f32 %v203
    %v206 = vcvt.s32.f32 %v204
    %v207 = vmul.f32 %v85, %v205
    %v208 = vmul.f32 %v86, %v206
    %v209 = vsel %vm174, %v207, 0.0
    %210 = vadd.xlane.f32.xlu0 %v209
    %v211 = vpop.xlane.xlu0 %210
    %v212 = vsel %vm174, %v208, 0.0
    %213 = vadd.xlane.f32.xlu0 %v212
    %v214 = vpop.xlane.xlu0 %213
    %v215 = vsub.f32 %v197, %v211
    %v216 = vsub.f32 %v198, %v214
    %vm217 = vcmp.ne.s32.totalorder %v172, 4
    %vm218 = vcmp.ne.s32.totalorder %v173, 4
    %v219 = vsel %vm217, 1, 0
    %v220 = vsel %vm218, 1, 0
    %v221 = vcvt.s32.f32 %v219
    %v222 = vcvt.s32.f32 %v220
    %v223 = vmul.f32 %v215, %v221
    %v224 = vmul.f32 %v216, %v222
    %vm225 = vcmask 7168
    %v226 = vsel %vm225, %v223, 0.0
    %v227 = vsel %vm225, %v224, 0.0
    %v228 = vadd.f32 %v226, %v227
    %229 = vadd.xlane.f32.xlu0 %v228
    %v230 = vpop.xlane.xlu0 %229
    %v231 = vrot.slane %v230, 4
    %v232 = vadd.f32 %v230, %v231
    %v233 = vrot.slane %v232, 2
    %v234 = vadd.f32 %v232, %v233
    %v235 = vrot.slane %v234, 1
    %v236 = vadd.f32 %v234, %v235
    %s237 = vtos %v236
    %v238 = vsel %vm225, %v221, 0.0
    %v239 = vsel %vm225, %v222, 0.0
    %v240 = vadd.f32 %v238, %v239
    %241 = vadd.xlane.f32.xlu0 %v240
    %v242 = vpop.xlane.xlu0 %241
    %v243 = vrot.slane %v242, 4
    %v244 = vadd.f32 %v242, %v243
    %v245 = vrot.slane %v244, 2
    %v246 = vadd.f32 %v244, %v245
    %v247 = vrot.slane %v246, 1
    %v248 = vadd.f32 %v246, %v247
    %s249 = vtos %v248
    %v250 = vstv %s249
    %v251 = vrcp.pop %v250
    %s252 = vtos %v251
    %s253 = smul.f32 %s237, %s252
    %s254 = smul.u32 %s92, 128
    %s255 = sld [smem:[#allocation8 + %s254]]
    %s256 = sadd.s32 %s254, 1
    %s257 = sld [smem:[#allocation8 + %s256]]
    %s258 = sadd.s32 %s254, 2
    %s259 = sld [smem:[#allocation8 + %s258]]
    %s260 = sadd.s32 %s254, 3
    %s261 = sld [smem:[#allocation8 + %s260]]
    %s262 = smul.u32 %s90, 128
    %s263 = sld [smem:[#allocation10 + %s262]]
    %s264 = sadd.s32 %s262, 1
    %s265 = sld [smem:[#allocation10 + %s264]]
    %s266 = sadd.s32 %s262, 2
    %s267 = sld [smem:[#allocation10 + %s266]]
    %s268 = sadd.s32 %s262, 3
    %s269 = sld [smem:[#allocation10 + %s268]]
    %s270 = ssub.f32 %s255, %s263
    %s271 = sand.u32 2147483647, %s270
    %s272 = ssub.f32 %s257, %s265
    %s273 = sand.u32 2147483647, %s272
    %s274 = sadd.f32 %s271, %s273
    %s275 = ssub.f32 %s259, %s267
    %s276 = sand.u32 2147483647, %s275
    %s277 = sadd.f32 %s274, %s276
    %s278 = ssub.f32 %s261, %s269
    %s279 = sand.u32 2147483647, %s278
    %s280 = sadd.f32 %s277, %s279
    %s281 = sadd.f32 %s280, 0.0
    %s282 = ssub.f32 %s259, %s255
    %s283 = ssub.f32 %s261, %s257
    %s284 = smul.f32 %s282, %s283
    %s285 = ssub.f32 %s267, %s263
    %s286 = ssub.f32 %s269, %s265
    %s287 = smul.f32 %s285, %s286
    %s288 = smin.f32 %s259, %s267
    %s289 = smax.f32 %s255, %s263
    %s290 = ssub.f32 %s288, %s289
    %s291 = smax.f32 %s290, 0.0
    %s292 = smin.f32 %s261, %s269
    %s293 = smax.f32 %s257, %s265
    %s294 = ssub.f32 %s292, %s293
    %s295 = smax.f32 %s294, 0.0
    %s296 = smul.f32 %s291, %s295
    %s297 = sadd.f32 %s284, %s287
    %s298 = ssub.f32 %s297, %s296
    %v299 = vstv %s298
    %v300 = vrcp.pop %v299
    %s301 = vtos %v300
    %s302 = smul.f32 %s296, %s301
    %s303 = smax.f32 %s259, %s267
    %s304 = smin.f32 %s255, %s263
    %s305 = ssub.f32 %s303, %s304
    %s306 = smax.f32 %s305, 0.0
    %s307 = smax.f32 %s261, %s269
    %s308 = smin.f32 %s257, %s265
    %s309 = ssub.f32 %s307, %s308
    %s310 = smax.f32 %s309, 0.0
    %s311 = smul.f32 %s306, %s310
    %s312 = ssub.f32 %s311, %s298
    %v313 = vstv %s311
    %v314 = vrcp.pop %v313
    %s315 = vtos %v314
    %s316 = smul.f32 %s312, %s315
    %s317 = ssub.f32 %s302, %s316
    %s318 = ssub.f32 1.0, %s317
    %s319 = sadd.f32 %s318, 0.0
    %s320 = smul.u32 %s104, 128
    %s321 = sld [smem:[#allocation8 + %s320]]
    %s322 = sadd.s32 %s320, 1
    %s323 = sld [smem:[#allocation8 + %s322]]
    %s324 = sadd.s32 %s320, 2
    %s325 = sld [smem:[#allocation8 + %s324]]
    %s326 = sadd.s32 %s320, 3
    %s327 = sld [smem:[#allocation8 + %s326]]
    %s328 = smul.u32 %s102, 128
    %s329 = sld [smem:[#allocation10 + %s328]]
    %s330 = sadd.s32 %s328, 1
    %s331 = sld [smem:[#allocation10 + %s330]]
    %s332 = sadd.s32 %s328, 2
    %s333 = sld [smem:[#allocation10 + %s332]]
    %s334 = sadd.s32 %s328, 3
    %s335 = sld [smem:[#allocation10 + %s334]]
    %s336 = ssub.f32 %s321, %s329
    %s337 = sand.u32 2147483647, %s336
    %s338 = ssub.f32 %s323, %s331
    %s339 = sand.u32 2147483647, %s338
    %s340 = sadd.f32 %s337, %s339
    %s341 = ssub.f32 %s325, %s333
    %s342 = sand.u32 2147483647, %s341
    %s343 = sadd.f32 %s340, %s342
    %s344 = ssub.f32 %s327, %s335
    %s345 = sand.u32 2147483647, %s344
    %s346 = sadd.f32 %s343, %s345
    %s347 = sadd.f32 %s281, %s346
    %s348 = ssub.f32 %s325, %s321
    %s349 = ssub.f32 %s327, %s323
    %s350 = smul.f32 %s348, %s349
    %s351 = ssub.f32 %s333, %s329
    %s352 = ssub.f32 %s335, %s331
    %s353 = smul.f32 %s351, %s352
    %s354 = smin.f32 %s325, %s333
    %s355 = smax.f32 %s321, %s329
    %s356 = ssub.f32 %s354, %s355
    %s357 = smax.f32 %s356, 0.0
    %s358 = smin.f32 %s327, %s335
    %s359 = smax.f32 %s323, %s331
    %s360 = ssub.f32 %s358, %s359
    %s361 = smax.f32 %s360, 0.0
    %s362 = smul.f32 %s357, %s361
    %s363 = sadd.f32 %s350, %s353
    %s364 = ssub.f32 %s363, %s362
    %v365 = vstv %s364
    %v366 = vrcp.pop %v365
    %s367 = vtos %v366
    %s368 = smul.f32 %s362, %s367
    %s369 = smax.f32 %s325, %s333
    %s370 = smin.f32 %s321, %s329
    %s371 = ssub.f32 %s369, %s370
    %s372 = smax.f32 %s371, 0.0
    %s373 = smax.f32 %s327, %s335
    %s374 = smin.f32 %s323, %s331
    %s375 = ssub.f32 %s373, %s374
    %s376 = smax.f32 %s375, 0.0
    %s377 = smul.f32 %s372, %s376
    %s378 = ssub.f32 %s377, %s364
    %v379 = vstv %s377
    %v380 = vrcp.pop %v379
    %s381 = vtos %v380
    %s382 = smul.f32 %s378, %s381
    %s383 = ssub.f32 %s368, %s382
    %s384 = ssub.f32 1.0, %s383
    %s385 = sadd.f32 %s319, %s384
    %s386 = smul.u32 %s118, 128
    %s387 = sld [smem:[#allocation8 + %s386]]
    %s388 = sadd.s32 %s386, 1
    %s389 = sld [smem:[#allocation8 + %s388]]
    %s390 = sadd.s32 %s386, 2
    %s391 = sld [smem:[#allocation8 + %s390]]
    %s392 = sadd.s32 %s386, 3
    %s393 = sld [smem:[#allocation8 + %s392]]
    %s394 = smul.u32 %s116, 128
    %s395 = sld [smem:[#allocation10 + %s394]]
    %s396 = sadd.s32 %s394, 1
    %s397 = sld [smem:[#allocation10 + %s396]]
    %s398 = sadd.s32 %s394, 2
    %s399 = sld [smem:[#allocation10 + %s398]]
    %s400 = sadd.s32 %s394, 3
    %s401 = sld [smem:[#allocation10 + %s400]]
    %s402 = ssub.f32 %s387, %s395
    %s403 = sand.u32 2147483647, %s402
    %s404 = ssub.f32 %s389, %s397
    %s405 = sand.u32 2147483647, %s404
    %s406 = sadd.f32 %s403, %s405
    %s407 = ssub.f32 %s391, %s399
    %s408 = sand.u32 2147483647, %s407
    %s409 = sadd.f32 %s406, %s408
    %s410 = ssub.f32 %s393, %s401
    %s411 = sand.u32 2147483647, %s410
    %s412 = sadd.f32 %s409, %s411
    %s413 = sadd.f32 %s347, %s412
    %s414 = ssub.f32 %s391, %s387
    %s415 = ssub.f32 %s393, %s389
    %s416 = smul.f32 %s414, %s415
    %s417 = ssub.f32 %s399, %s395
    %s418 = ssub.f32 %s401, %s397
    %s419 = smul.f32 %s417, %s418
    %s420 = smin.f32 %s391, %s399
    %s421 = smax.f32 %s387, %s395
    %s422 = ssub.f32 %s420, %s421
    %s423 = smax.f32 %s422, 0.0
    %s424 = smin.f32 %s393, %s401
    %s425 = smax.f32 %s389, %s397
    %s426 = ssub.f32 %s424, %s425
    %s427 = smax.f32 %s426, 0.0
    %s428 = smul.f32 %s423, %s427
    %s429 = sadd.f32 %s416, %s419
    %s430 = ssub.f32 %s429, %s428
    %v431 = vstv %s430
    %v432 = vrcp.pop %v431
    %s433 = vtos %v432
    %s434 = smul.f32 %s428, %s433
    %s435 = smax.f32 %s391, %s399
    %s436 = smin.f32 %s387, %s395
    %s437 = ssub.f32 %s435, %s436
    %s438 = smax.f32 %s437, 0.0
    %s439 = smax.f32 %s393, %s401
    %s440 = smin.f32 %s389, %s397
    %s441 = ssub.f32 %s439, %s440
    %s442 = smax.f32 %s441, 0.0
    %s443 = smul.f32 %s438, %s442
    %s444 = ssub.f32 %s443, %s430
    %v445 = vstv %s443
    %v446 = vrcp.pop %v445
    %s447 = vtos %v446
    %s448 = smul.f32 %s444, %s447
    %s449 = ssub.f32 %s434, %s448
    %s450 = ssub.f32 1.0, %s449
    %s451 = sadd.f32 %s385, %s450
    %s452 = smul.u32 %s132, 128
    %s453 = sld [smem:[#allocation8 + %s452]]
    %s454 = sadd.s32 %s452, 1
    %s455 = sld [smem:[#allocation8 + %s454]]
    %s456 = sadd.s32 %s452, 2
    %s457 = sld [smem:[#allocation8 + %s456]]
    %s458 = sadd.s32 %s452, 3
    %s459 = sld [smem:[#allocation8 + %s458]]
    %s460 = smul.u32 %s130, 128
    %s461 = sld [smem:[#allocation10 + %s460]]
    %s462 = sadd.s32 %s460, 1
    %s463 = sld [smem:[#allocation10 + %s462]]
    %s464 = sadd.s32 %s460, 2
    %s465 = sld [smem:[#allocation10 + %s464]]
    %s466 = sadd.s32 %s460, 3
    %s467 = sld [smem:[#allocation10 + %s466]]
    %s468 = ssub.f32 %s453, %s461
    %s469 = sand.u32 2147483647, %s468
    %s470 = ssub.f32 %s455, %s463
    %s471 = sand.u32 2147483647, %s470
    %s472 = sadd.f32 %s469, %s471
    %s473 = ssub.f32 %s457, %s465
    %s474 = sand.u32 2147483647, %s473
    %s475 = sadd.f32 %s472, %s474
    %s476 = ssub.f32 %s459, %s467
    %s477 = sand.u32 2147483647, %s476
    %s478 = sadd.f32 %s475, %s477
    %s479 = sadd.f32 %s413, %s478
    %s480 = ssub.f32 %s457, %s453
    %s481 = ssub.f32 %s459, %s455
    %s482 = smul.f32 %s480, %s481
    %s483 = ssub.f32 %s465, %s461
    %s484 = ssub.f32 %s467, %s463
    %s485 = smul.f32 %s483, %s484
    %s486 = smin.f32 %s457, %s465
    %s487 = smax.f32 %s453, %s461
    %s488 = ssub.f32 %s486, %s487
    %s489 = smax.f32 %s488, 0.0
    %s490 = smin.f32 %s459, %s467
    %s491 = smax.f32 %s455, %s463
    %s492 = ssub.f32 %s490, %s491
    %s493 = smax.f32 %s492, 0.0
    %s494 = smul.f32 %s489, %s493
    %s495 = sadd.f32 %s482, %s485
    %s496 = ssub.f32 %s495, %s494
    %v497 = vstv %s496
    %v498 = vrcp.pop %v497
    %s499 = vtos %v498
    %s500 = smul.f32 %s494, %s499
    %s501 = smax.f32 %s457, %s465
    %s502 = smin.f32 %s453, %s461
    %s503 = ssub.f32 %s501, %s502
    %s504 = smax.f32 %s503, 0.0
    %s505 = smax.f32 %s459, %s467
    %s506 = smin.f32 %s455, %s463
    %s507 = ssub.f32 %s505, %s506
    %s508 = smax.f32 %s507, 0.0
    %s509 = smul.f32 %s504, %s508
    %s510 = ssub.f32 %s509, %s496
    %v511 = vstv %s509
    %v512 = vrcp.pop %v511
    %s513 = vtos %v512
    %s514 = smul.f32 %s510, %s513
    %s515 = ssub.f32 %s500, %s514
    %s516 = ssub.f32 1.0, %s515
    %s517 = sadd.f32 %s451, %s516
    %s518 = smul.u32 %s146, 128
    %s519 = sld [smem:[#allocation8 + %s518]]
    %s520 = sadd.s32 %s518, 1
    %s521 = sld [smem:[#allocation8 + %s520]]
    %s522 = sadd.s32 %s518, 2
    %s523 = sld [smem:[#allocation8 + %s522]]
    %s524 = sadd.s32 %s518, 3
    %s525 = sld [smem:[#allocation8 + %s524]]
    %s526 = smul.u32 %s144, 128
    %s527 = sld [smem:[#allocation10 + %s526]]
    %s528 = sadd.s32 %s526, 1
    %s529 = sld [smem:[#allocation10 + %s528]]
    %s530 = sadd.s32 %s526, 2
    %s531 = sld [smem:[#allocation10 + %s530]]
    %s532 = sadd.s32 %s526, 3
    %s533 = sld [smem:[#allocation10 + %s532]]
    %s534 = ssub.f32 %s519, %s527
    %s535 = sand.u32 2147483647, %s534
    %s536 = ssub.f32 %s521, %s529
    %s537 = sand.u32 2147483647, %s536
    %s538 = sadd.f32 %s535, %s537
    %s539 = ssub.f32 %s523, %s531
    %s540 = sand.u32 2147483647, %s539
    %s541 = sadd.f32 %s538, %s540
    %s542 = ssub.f32 %s525, %s533
    %s543 = sand.u32 2147483647, %s542
    %s544 = sadd.f32 %s541, %s543
    %s545 = sadd.f32 %s479, %s544
    %s546 = ssub.f32 %s523, %s519
    %s547 = ssub.f32 %s525, %s521
    %s548 = smul.f32 %s546, %s547
    %s549 = ssub.f32 %s531, %s527
    %s550 = ssub.f32 %s533, %s529
    %s551 = smul.f32 %s549, %s550
    %s552 = smin.f32 %s523, %s531
    %s553 = smax.f32 %s519, %s527
    %s554 = ssub.f32 %s552, %s553
    %s555 = smax.f32 %s554, 0.0
    %s556 = smin.f32 %s525, %s533
    %s557 = smax.f32 %s521, %s529
    %s558 = ssub.f32 %s556, %s557
    %s559 = smax.f32 %s558, 0.0
    %s560 = smul.f32 %s555, %s559
    %s561 = sadd.f32 %s548, %s551
    %s562 = ssub.f32 %s561, %s560
    %v563 = vstv %s562
    %v564 = vrcp.pop %v563
    %s565 = vtos %v564
    %s566 = smul.f32 %s560, %s565
    %s567 = smax.f32 %s523, %s531
    %s568 = smin.f32 %s519, %s527
    %s569 = ssub.f32 %s567, %s568
    %s570 = smax.f32 %s569, 0.0
    %s571 = smax.f32 %s525, %s533
    %s572 = smin.f32 %s521, %s529
    %s573 = ssub.f32 %s571, %s572
    %s574 = smax.f32 %s573, 0.0
    %s575 = smul.f32 %s570, %s574
    %s576 = ssub.f32 %s575, %s562
    %v577 = vstv %s575
    %v578 = vrcp.pop %v577
    %s579 = vtos %v578
    %s580 = smul.f32 %s576, %s579
    %s581 = ssub.f32 %s566, %s580
    %s582 = ssub.f32 1.0, %s581
    %s583 = sadd.f32 %s517, %s582
    %s584 = smul.u32 %s160, 128
    %s585 = sld [smem:[#allocation8 + %s584]]
    %s586 = sadd.s32 %s584, 1
    %s587 = sld [smem:[#allocation8 + %s586]]
    %s588 = sadd.s32 %s584, 2
    %s589 = sld [smem:[#allocation8 + %s588]]
    %s590 = sadd.s32 %s584, 3
    %s591 = sld [smem:[#allocation8 + %s590]]
    %s592 = smul.u32 %s158, 128
    %s593 = sld [smem:[#allocation10 + %s592]]
    %s594 = sadd.s32 %s592, 1
    %s595 = sld [smem:[#allocation10 + %s594]]
    %s596 = sadd.s32 %s592, 2
    %s597 = sld [smem:[#allocation10 + %s596]]
    %s598 = sadd.s32 %s592, 3
    %s599 = sld [smem:[#allocation10 + %s598]]
    %s600 = ssub.f32 %s585, %s593
    %s601 = sand.u32 2147483647, %s600
    %s602 = ssub.f32 %s587, %s595
    %s603 = sand.u32 2147483647, %s602
    %s604 = sadd.f32 %s601, %s603
    %s605 = ssub.f32 %s589, %s597
    %s606 = sand.u32 2147483647, %s605
    %s607 = sadd.f32 %s604, %s606
    %s608 = ssub.f32 %s591, %s599
    %s609 = sand.u32 2147483647, %s608
    %s610 = sadd.f32 %s607, %s609
    %s611 = sadd.f32 %s545, %s610
    %s612 = ssub.f32 %s589, %s585
    %s613 = ssub.f32 %s591, %s587
    %s614 = smul.f32 %s612, %s613
    %s615 = ssub.f32 %s597, %s593
    %s616 = ssub.f32 %s599, %s595
    %s617 = smul.f32 %s615, %s616
    %s618 = smin.f32 %s589, %s597
    %s619 = smax.f32 %s585, %s593
    %s620 = ssub.f32 %s618, %s619
    %s621 = smax.f32 %s620, 0.0
    %s622 = smin.f32 %s591, %s599
    %s623 = smax.f32 %s587, %s595
    %s624 = ssub.f32 %s622, %s623
    %s625 = smax.f32 %s624, 0.0
    %s626 = smul.f32 %s621, %s625
    %s627 = sadd.f32 %s614, %s617
    %s628 = ssub.f32 %s627, %s626
    %v629 = vstv %s628
    %v630 = vrcp.pop %v629
    %s631 = vtos %v630
    %s632 = smul.f32 %s626, %s631
    %s633 = smax.f32 %s589, %s597
    %s634 = smin.f32 %s585, %s593
    %s635 = ssub.f32 %s633, %s634
    %s636 = smax.f32 %s635, 0.0
    %s637 = smax.f32 %s591, %s599
    %s638 = smin.f32 %s587, %s595
    %s639 = ssub.f32 %s637, %s638
    %s640 = smax.f32 %s639, 0.0
    %s641 = smul.f32 %s636, %s640
    %s642 = ssub.f32 %s641, %s628
    %v643 = vstv %s641
    %v644 = vrcp.pop %v643
    %s645 = vtos %v644
    %s646 = smul.f32 %s642, %s645
    %s647 = ssub.f32 %s632, %s646
    %s648 = ssub.f32 1.0, %s647
    %s649 = sadd.f32 %s583, %s648
    %s650 = smul.f32 %s611, 0.16666667
    %s651 = smul.f32 %s649, 0.16666667
    %vm652 = vcmp.eq.s32.totalorder %v200, 0
    %vm653 = vcmp.eq.s32.totalorder %v200, 1
    %vm654 = vcmp.eq.s32.totalorder %v200, 2
    %v655 = vstv %s651
    %v656 = vsel %vm654, %v655, 0.0
    %v657 = vstv %s650
    %v658 = vsel %vm653, %v657, %v656
    %v659 = vstv %s253
    %v660 = vsel %vm652, %v659, %v658
    %661 = vst [vmem:[#allocation11] sm:$0x1] %v660
    // Predicated region
    $region46: #{tpu_custom_call.1} parent=1 // pred_check
      _
    $region47: #{tpu_custom_call.1} parent=1 // pred_check_branch
      %663 = sbr.rel (0) target = $region49
    $region48: #{tpu_custom_call.1} parent=1 // pred_region
      %s665 = ssub.s32 16, 16
      %666 = vsyncadd [#allocation3], %s665
      %s668 = sshll.u32 [#allocation11], 4
      %s669 = int_to_ptr.vmem [resolvable:$true] %s668
      %671 = dma.vmem_to_hbm [thread:$0]  %s669, 16, %s6, [#allocation3]
    $region49: #{tpu_custom_call.1} parent=1 // pred_fallthru
      _
    // Predicated region
    $region50: #{tpu_custom_call.1} parent=1 // pred_check
      _
    $region51: #{tpu_custom_call.1} parent=1 // pred_check_branch
      %673 = sbr.rel (0) target = $region53
    $region52: #{tpu_custom_call.1} parent=1 // pred_region
      %674 = dma.done [#allocation3], 16
    $region53: #{tpu_custom_call.1} parent=1 // pred_fallthru
      _
    %675 = vsyncpa [#allocation3], 1
    %676 = vsyncpa [#allocation4], 1
    %677 = vsyncpa [#allocation6], 1
    %678 = vsyncpa [#allocation9], 1

</llo_original>
